<compile_context>
chip_gen: v5e
topology: v5e:2x2
jax: 0.10.0
libtpu: 0.0.40
codegen_flags: <defaults>
</compile_context>

<pallas_src>
import math

import jax
import jax.numpy as jnp
from jax import lax
from jax.experimental import pallas as pl
from jax.experimental.pallas import tpu as pltpu

_EPS = 1e-5
_VMEM_LIMIT = None
_BUFFERED_OK = None


# ----------------------------------------------------------------------------------------------
# Generation-keyed tuning knobs (VMEM limit, single-buffered-weights support)
# ----------------------------------------------------------------------------------------------

def _vmem_limit_bytes():
    """~3/4 of physical VMEM: ~96 MiB on v5e/v6e (128 MiB), ~48 MiB on v7x (64 MiB)."""
    global _VMEM_LIMIT
    if _VMEM_LIMIT is None:
        try:
            cap = int(pltpu.get_tpu_info().vmem_capacity_bytes)
        except Exception:
            cap = 64 * 1024 * 1024
        _VMEM_LIMIT = max(32 * 1024 * 1024, min(cap * 3 // 4, 112 * 1024 * 1024))
    return _VMEM_LIMIT


def _cparams(*sems):
    return pltpu.CompilerParams(dimension_semantics=sems, vmem_limit_bytes=_vmem_limit_bytes())


def _probe_copy_kernel(x_ref, o_ref):
    o_ref[...] = x_ref[...]


def buffered_weights_supported():
    """Probe whether pl.BlockSpec(pipeline_mode=pl.Buffered(1)) compiles on this install."""
    global _BUFFERED_OK
    if _BUFFERED_OK is None:
        try:
            spec = pl.BlockSpec((8, 128), lambda i: (0, 0), pipeline_mode=pl.Buffered(1))
            out = pl.pallas_call(
                _probe_copy_kernel,
                grid=(1,),
                in_specs=[spec],
                out_specs=pl.BlockSpec((8, 128), lambda i: (0, 0)),
                out_shape=jax.ShapeDtypeStruct((8, 128), jnp.float32),
            )(jnp.zeros((8, 128), jnp.float32))
            jax.block_until_ready(out)
            _BUFFERED_OK = True
        except Exception:
            _BUFFERED_OK = False
    return _BUFFERED_OK


def _pick_tile(n, target):
    if n <= target:
        return n
    for t in (target, 256, 128, 64):
        if n % t == 0:
            return t
    return n


# ----------------------------------------------------------------------------------------------
# Tiled linear kernel with K-reduction axis (P3 accumulator pattern)
# ----------------------------------------------------------------------------------------------

def pallas_linear(x, w, b, act=None, out_dtype=jnp.bfloat16):
    """y = act(x @ w + b) over the last dim.  bf16 operands, f32 VMEM accumulator, (M,N,K) grid."""
    orig_shape = x.shape
    din = orig_shape[-1]
    x2 = x.reshape(-1, din).astype(jnp.bfloat16)
    m = x2.shape[0]
    dout = w.shape[1]
    w2 = w.astype(jnp.bfloat16)
    b2 = b.reshape(1, dout).astype(jnp.float32)

    big = _vmem_limit_bytes() >= 80 * 1024 * 1024   # v5e/v6e: bigger tiles, ~85% of HBM roofline
    tm_cap = 512 if big else 256
    tn_cap = 1024 if big else 512
    tm = m if m <= tm_cap else tm_cap
    tn = dout if dout <= tn_cap else tn_cap
    # tk must divide din exactly (edge K blocks would accumulate garbage into valid outputs).
    if din <= 2048:
        tk = din
    else:
        tk = next((t for t in (1024, 512, 256) if din % t == 0), din)
    nk = din // tk

    def kernel(x_ref, w_ref, b_ref, o_ref, acc_ref):
        @pl.when(pl.program_id(2) == 0)
        def _():
            acc_ref[...] = jnp.broadcast_to(b_ref[...], acc_ref.shape)

        acc_ref[...] += jnp.dot(x_ref[...], w_ref[...], preferred_element_type=jnp.float32)

        @pl.when(pl.program_id(2) == nk - 1)
        def _():
            y = acc_ref[...]
            if act == "relu":
                y = jnp.maximum(y, 0.0)
            o_ref[...] = y.astype(o_ref.dtype)

    out = pl.pallas_call(
        kernel,
        grid=(pl.cdiv(m, tm), pl.cdiv(dout, tn), nk),
        in_specs=[
            pl.BlockSpec((tm, tk), lambda i, j, k: (i, k)),
            pl.BlockSpec((tk, tn), lambda i, j, k: (k, j)),
            pl.BlockSpec((1, tn), lambda i, j, k: (0, j)),
        ],
        out_specs=pl.BlockSpec((tm, tn), lambda i, j, k: (i, j)),
        out_shape=jax.ShapeDtypeStruct((m, dout), out_dtype),
        scratch_shapes=[pltpu.VMEM((tm, tn), jnp.float32)],
        compiler_params=_cparams("parallel", "parallel", "arbitrary"),
    )(x2, w2, b2)
    return out.reshape(orig_shape[:-1] + (dout,))


# ----------------------------------------------------------------------------------------------
# Fused FFT layer kernel (SALN + flash MHA + residual + SALN + conv-FFN + residual [+ final LN])
# ----------------------------------------------------------------------------------------------

def fused_fft_layer(x, m_row, m_col, gb1, gb2, lp, nH, kk, gbF=None, buffered_ok=False):
    B, T, D = x.shape
    Dh = D // nH
    pad = kk // 2
    Ff = lp["w1"].shape[-1]
    final_ln = gbF is not None
    scale = 1.0 / math.sqrt(Dh)

    kv_blk = _pick_tile(T, 512)         # online-softmax KV block: score VMEM is T*kv_blk f32
    n_kv = T // kv_blk

    def kernel(x_ref, mrow_ref, mcol_ref, gb1_ref, wqkv_ref, bqkv_ref, wo_ref, bo_ref,
               gb2_ref, w1_ref, b1_ref, w2_ref, b2_ref, *rest):
        if final_ln:
            gbF_ref, o_ref = rest
        else:
            (o_ref,) = rest

        xv = x_ref[0].astype(jnp.float32)                       # residual stream kept f32 in VMEM
        kbias = jnp.where(mrow_ref[0] > 0.0, 0.0, -1e30)        # (1,T) additive key-mask bias
        m_c = mcol_ref[0]                                       # (T,1) residual mask

        def saln(v, gb_ref):
            g = gb_ref[0, 0:1, :]
            bta = gb_ref[0, 1:2, :]
            mu = jnp.mean(v, axis=-1, keepdims=True)
            var = jnp.mean(jnp.square(v - mu), axis=-1, keepdims=True)
            return (v - mu) * lax.rsqrt(var + _EPS) * g + bta

        # ---- self-attention sub-layer (pre-norm, residual, key mask) -------------------------
        h = saln(xv, gb1_ref).astype(jnp.bfloat16)
        # fused QKV: one full-width MXU contraction (columns = [Q heads | K heads | V heads])
        qkv = jnp.dot(h, wqkv_ref[...], preferred_element_type=jnp.float32) + bqkv_ref[...]
        heads = []
        for hd in range(nH):                                    # static unroll over heads
            q = qkv[:, hd * Dh:(hd + 1) * Dh].astype(jnp.bfloat16)
            kh = qkv[:, D + hd * Dh:D + (hd + 1) * Dh].astype(jnp.bfloat16)
            vh = qkv[:, 2 * D + hd * Dh:2 * D + (hd + 1) * Dh].astype(jnp.bfloat16)
            m_i = jnp.full((T, 1), -1e30, jnp.float32)
            l_i = jnp.zeros((T, 1), jnp.float32)
            acc = jnp.zeros((T, Dh), jnp.float32)
            for kb in range(n_kv):                              # flash-style online softmax
                ks = kh[kb * kv_blk:(kb + 1) * kv_blk, :]
                vs = vh[kb * kv_blk:(kb + 1) * kv_blk, :]
                s = lax.dot_general(q, ks, (((1,), (1,)), ((), ())),
                                    preferred_element_type=jnp.float32) * scale
                s = s + kbias[:, kb * kv_blk:(kb + 1) * kv_blk]
                m_new = jnp.maximum(m_i, jnp.max(s, axis=-1, keepdims=True))
                alpha = jnp.exp(m_i - m_new)
                p = jnp.exp(s - m_new)
                l_i = alpha * l_i + jnp.sum(p, axis=-1, keepdims=True)
                acc = alpha * acc + jnp.dot(p.astype(jnp.bfloat16), vs,
                                            preferred_element_type=jnp.float32)
                m_i = m_new
            heads.append((acc * pl.reciprocal(l_i, approx=True)).astype(jnp.bfloat16))
        att_cat = jnp.concatenate(heads, axis=-1) if nH > 1 else heads[0]
        # single full-depth (K = D) out-projection
        att = jnp.dot(att_cat, wo_ref[...], preferred_element_type=jnp.float32) + bo_ref[...]
        xv = xv + att * m_c

        # ---- conv-FFN sub-layer: k-tap accumulation from a zero-padded bf16 value ------------
        h2 = saln(xv, gb2_ref).astype(jnp.bfloat16)
        if pad > 0:
            zrows = jnp.zeros((pad, D), jnp.bfloat16)
            hpad = jnp.concatenate([zrows, h2, zrows], axis=0)
        else:
            hpad = h2
        mid = jnp.zeros((T, Ff), jnp.float32)
        for tap in range(kk):                                   # static unroll over conv taps
            mid = mid + jnp.dot(hpad[tap:tap + T, :], w1_ref[tap],
                                preferred_element_type=jnp.float32)
        mid = jnp.maximum(mid + b1_ref[...], 0.0).astype(jnp.bfloat16)
        ffn = jnp.dot(mid, w2_ref[...], preferred_element_type=jnp.float32) + b2_ref[...]
        xv = xv + ffn * m_c

        if final_ln:
            xv = saln(xv, gbF_ref) * m_c
        o_ref[0] = xv.astype(o_ref.dtype)

    def wspec(shape):
        imap = lambda b: (0,) * len(shape)   # grid-invariant weights
        if buffered_ok:
            return pl.BlockSpec(shape, imap, pipeline_mode=pl.Buffered(1))
        return pl.BlockSpec(shape, imap)

    ins = [x, m_row, m_col, gb1,
           lp["wqkv"], lp["bqkv"], lp["wo"], lp["bo"],
           gb2, lp["w1"], lp["b1"], lp["w2"], lp["b2"]]
    in_specs = [
        pl.BlockSpec((1, T, D), lambda b: (b, 0, 0)),
        pl.BlockSpec((1, 1, T), lambda b: (b, 0, 0)),
        pl.BlockSpec((1, T, 1), lambda b: (b, 0, 0)),
        pl.BlockSpec((1, 2, D), lambda b: (b, 0, 0)),
        wspec((D, 3 * D)), wspec((1, 3 * D)), wspec((D, D)), wspec((1, D)),
        pl.BlockSpec((1, 2, D), lambda b: (b, 0, 0)),
        wspec((kk, D, Ff)), wspec((1, Ff)), wspec((Ff, D)), wspec((1, D)),
    ]
    if final_ln:
        ins.append(gbF)
        in_specs.append(pl.BlockSpec((1, 2, D), lambda b: (b, 0, 0)))

    # TODO(synk): a query-tile 'parallel' grid axis (for v7x with B=1) would require either a
    # halo on the conv-FFN taps or splitting attention/FFN into separate kernels.
    return pl.pallas_call(
        kernel,
        grid=(B,),
        in_specs=in_specs,
        out_specs=pl.BlockSpec((1, T, D), lambda b: (b, 0, 0)),
        out_shape=jax.ShapeDtypeStruct((B, T, D), jnp.bfloat16),
        compiler_params=_cparams("parallel"),
    )(*ins)


def fft_blocks(x, style, mod, mask, buffered_ok):
    """FastSpeech-style FFT blocks with style-adaptive (saln) or plain (mixstyle) layer norm."""
    # TODO(synk): MixStyle statistic mixing is training-time only; at inference it reduces to LN.
    B, T, D = x.shape
    x = x.astype(jnp.bfloat16)
    m_row = mask.reshape(B, 1, T).astype(jnp.float32)
    m_col = mask.reshape(B, T, 1).astype(jnp.float32)
    layers = mod["layers"]
    n_layers = len(layers)

    if mod["norm"] == "saln":
        gb_all = pallas_linear(style, mod["saln_w_all"], mod["saln_b_all"], out_dtype=jnp.float32)
        gb_all = gb_all.reshape(B, n_layers, 2, 2, D)   # [layer, sublayer, {gamma,beta}, D]
    else:
        gb_all = None
    gbF = jnp.broadcast_to(mod["final_gb"][None], (B, 2, D))

    for li, lp in enumerate(layers):
        if gb_all is not None:
            gb1, gb2 = gb_all[:, li, 0], gb_all[:, li, 1]
        else:
            gb1 = jnp.broadcast_to(lp["ln1_gb"][None], (B, 2, D))
            gb2 = jnp.broadcast_to(lp["ln2_gb"][None], (B, 2, D))
        is_last = li == n_layers - 1
        x = fused_fft_layer(x, m_row, m_col, gb1, gb2, lp,
                            mod["num_heads"], mod["kernel_size"],
                            gbF=gbF if is_last else None, buffered_ok=buffered_ok)
    return x


# ----------------------------------------------------------------------------------------------
# Unit aligner (fused q-proj + cross-attention + out-proj + in-kernel argmax)
# ----------------------------------------------------------------------------------------------

def pallas_unit_aligner(x, ua, embed, buffered_ok=False):
    """Cross-attention of frame queries against the unit dictionary (single head).
    Returns (attended (B,L,H) bf16, before-softmax logits (B,L,S) bf16, argmax (B,L) int32)."""
    B, L, H = x.shape
    S = embed.shape[0]
    scale = 1.0 / math.sqrt(H)

    # k/v projections of the shared dictionary: one fused matmul.
    kv = pallas_linear(embed, ua["kv_w"], ua["kv_b"], out_dtype=jnp.bfloat16)  # (S, 2H)
    keys, vals = kv[:, :H], kv[:, H:]

    tl = _pick_tile(L, 512)   # query-tile axis keeps both v7x TensorCores busy at large L

    def kernel(x_ref, qw_ref, qb_ref, k_ref, v_ref, ow_ref, ob_ref, o_ref, lg_ref, am_ref):
        q = jnp.dot(x_ref[0], qw_ref[...], preferred_element_type=jnp.float32) + qb_ref[...]
        s = lax.dot_general(q.astype(jnp.bfloat16), k_ref[...],
                            (((1,), (1,)), ((), ())),
                            preferred_element_type=jnp.float32) * scale
        lg_ref[0] = s.astype(lg_ref.dtype)       # need_weights=True, before_softmax=True
        # in-kernel argmax (first max index, like torch.argmax); avoids re-reading logits in HBM
        mx = jnp.max(s, axis=-1, keepdims=True)
        idx = lax.broadcasted_iota(jnp.int32, s.shape, 1).astype(jnp.float32)
        am = jnp.min(jnp.where(s >= mx, idx, 3.0e38), axis=-1, keepdims=True)
        am_ref[0] = am.astype(jnp.int32)
        p = jnp.exp(s - mx)
        p = p * pl.reciprocal(jnp.sum(p, axis=-1, keepdims=True), approx=True)
        a = jnp.dot(p.astype(jnp.bfloat16), v_ref[...], preferred_element_type=jnp.float32)
        out = jnp.dot(a.astype(jnp.bfloat16), ow_ref[...],
                      preferred_element_type=jnp.float32) + ob_ref[...]
        o_ref[0] = out.astype(o_ref.dtype)

    def wspec(shape):
        imap = lambda b, l: (0,) * len(shape)
        if buffered_ok:
            return pl.BlockSpec(shape, imap, pipeline_mode=pl.Buffered(1))
        return pl.BlockSpec(shape, imap)

    out, logits, am = pl.pallas_call(
        kernel,
        grid=(B, L // tl),
        in_specs=[
            pl.BlockSpec((1, tl, H), lambda b, l: (b, l, 0)),
            wspec((H, H)), wspec((1, H)),
            wspec((S, H)), wspec((S, H)),
            wspec((H, H)), wspec((1, H)),
        ],
        out_specs=[
            pl.BlockSpec((1, tl, H), lambda b, l: (b, l, 0)),
            pl.BlockSpec((1, tl, S), lambda b, l: (b, l, 0)),
            pl.BlockSpec((1, tl, 1), lambda b, l: (b, l, 0)),
        ],
        out_shape=(
            jax.ShapeDtypeStruct((B, L, H), jnp.bfloat16),
            jax.ShapeDtypeStruct((B, L, S), jnp.bfloat16),
            jax.ShapeDtypeStruct((B, L, 1), jnp.int32),
        ),
        compiler_params=_cparams("parallel", "parallel"),
    )(x.astype(jnp.bfloat16), ua["q_w"], ua["q_b"], keys, vals, ua["o_w"], ua["o_b"])
    return out, logits, am[:, :, 0]


# ----------------------------------------------------------------------------------------------
# Segment mean (group_hidden_by_segs), U-tiled, bf16 selector, unit-id-0-safe grouped ids
# ----------------------------------------------------------------------------------------------

def pallas_segment_mean(x, mel2unit, unit_pred, num_segs):
    B, L, D = x.shape
    U = num_segs
    m2u = mel2unit.reshape(B, 1, L).astype(jnp.int32)
    upf = unit_pred.reshape(B, 1, L).astype(jnp.float32)
    tu = _pick_tile(U, 512)

    def kernel(m_ref, u_ref, x_ref, xu_ref, cnt_ref, upg_ref):
        u0 = pl.program_id(1) * tu
        seg = m_ref[0]                                                    # (1, L) int32
        seg_ids = lax.broadcasted_iota(jnp.int32, (tu, L), 0) + (u0 + 1)  # groups are 1-indexed
        oh = seg == seg_ids                                               # (tu, L) bool
        cnt = jnp.sum(oh.astype(jnp.float32), axis=1, keepdims=True)      # exact counts
        sums = jnp.dot(oh.astype(jnp.bfloat16), x_ref[0],
                       preferred_element_type=jnp.float32)                # (tu, D)
        xu_ref[0] = (sums / jnp.maximum(cnt, 1.0)).astype(xu_ref.dtype)   # exact division
        cnt_ref[0] = cnt
        # +1/-1 so a genuine unit-0 segment stays distinguishable from padding (padding -> -1)
        upg_ref[0] = jnp.max(jnp.where(oh, u_ref[0] + 1.0, 0.0), axis=1, keepdims=True) - 1.0

    xu, cnt, upg = pl.pallas_call(
        kernel,
        grid=(B, U // tu),
        in_specs=[
            pl.BlockSpec((1, 1, L), lambda b, u: (b, 0, 0)),
            pl.BlockSpec((1, 1, L), lambda b, u: (b, 0, 0)),
            pl.BlockSpec((1, L, D), lambda b, u: (b, 0, 0)),
        ],
        out_specs=[
            pl.BlockSpec((1, tu, D), lambda b, u: (b, u, 0)),
            pl.BlockSpec((1, tu, 1), lambda b, u: (b, u, 0)),
            pl.BlockSpec((1, tu, 1), lambda b, u: (b, u, 0)),
        ],
        out_shape=(
            jax.ShapeDtypeStruct((B, U, D), jnp.bfloat16),
            jax.ShapeDtypeStruct((B, U, 1), jnp.float32),
            jax.ShapeDtypeStruct((B, U, 1), jnp.float32),
        ),
        compiler_params=_cparams("parallel", "parallel"),
    )(m2u, upf, x.astype(jnp.bfloat16))
    return xu, cnt[:, :, 0], upg[:, :, 0].astype(jnp.int32)


# ----------------------------------------------------------------------------------------------
# Plain-JAX glue
# ----------------------------------------------------------------------------------------------

def linear_interp_time(x, out_len):
    """F.interpolate(mode='linear', align_corners=False) along the time axis.  x: (B,T,C)."""
    B, T, C = x.shape
    if out_len == T:
        return x
    pos = (jnp.arange(out_len, dtype=jnp.float32) + 0.5) * (T / out_len) - 0.5
    pos = jnp.clip(pos, 0.0, T - 1.0)
    lo = jnp.floor(pos).astype(jnp.int32)
    hi = jnp.minimum(lo + 1, T - 1)
    w = (pos - lo.astype(jnp.float32))[None, :, None]
    return x[:, lo, :] * (1.0 - w) + x[:, hi, :] * w


# ----------------------------------------------------------------------------------------------
# Parameter initialization (deterministic, synthetic; kernel-ready layouts built ONCE here)
# ----------------------------------------------------------------------------------------------

def init_params(key, hp, dict_size):
    keys = iter(jax.random.split(key, 256))

    def nrm(shape, std=0.02):
        return (std * jax.random.normal(next(keys), shape)).astype(jnp.float32)

    H = hp["hidden_size"]
    k = hp["enc_kernel_size"]
    nH = hp["num_heads"]
    Ff = 4 * H

    def fft_module(norm):
        layers, saln_w, saln_b = [], [], []
        for _ in range(hp["enc_layers"]):
            lp = {
                # pre-cast / pre-laid-out once (perf feedback): no per-call weight reshapes
                "wqkv": nrm((H, 3 * H)).astype(jnp.bfloat16),
                "bqkv": jnp.zeros((1, 3 * H), jnp.float32),
                "wo": nrm((H, H)).astype(jnp.bfloat16),
                "bo": jnp.zeros((1, H), jnp.float32),
                "w1": nrm((k, H, Ff)).astype(jnp.bfloat16),
                "b1": jnp.zeros((1, Ff), jnp.float32),
                "w2": nrm((Ff, H)).astype(jnp.bfloat16),
                "b2": jnp.zeros((1, H), jnp.float32),
            }
            if norm == "saln":
                saln_w.append(jnp.concatenate([nrm((H, 2 * H)), nrm((H, 2 * H))], axis=1))
                saln_b.append(jnp.concatenate(
                    [jnp.ones((H,)), jnp.zeros((H,)), jnp.ones((H,)), jnp.zeros((H,))]
                ).astype(jnp.float32))
            else:
                lp["ln1_gb"] = jnp.stack([jnp.ones((H,), jnp.float32), jnp.zeros((H,), jnp.float32)])
                lp["ln2_gb"] = jnp.stack([jnp.ones((H,), jnp.float32), jnp.zeros((H,), jnp.float32)])
            layers.append(lp)
        mod = dict(norm=norm, layers=layers, num_heads=nH, kernel_size=k,
                   final_gb=jnp.stack([jnp.ones((H,), jnp.float32), jnp.zeros((H,), jnp.float32)]))
        if norm == "saln":
            mod["saln_w_all"] = jnp.concatenate(saln_w, axis=1).astype(jnp.bfloat16)
            mod["saln_b_all"] = jnp.concatenate(saln_b)
        return mod

    p = {
        "emo_table": nrm((5, H), 0.1),
        "spk_table": nrm((hp["num_spk"], H), 0.1),
        "feat_proj": dict(w=nrm((hp["feature_dims"], H)).astype(jnp.bfloat16),
                          b=jnp.zeros((H,), jnp.float32)),
        "embed": nrm((dict_size, H), 0.5),   # nn.init.normal_(std=0.5)
        "proj_m": dict(w=nrm((H, hp["audio_num_mel_bins"])).astype(jnp.bfloat16),
                       b=jnp.zeros((hp["audio_num_mel_bins"],), jnp.float32)),
        "unit_aligner": dict(
            q_w=nrm((H, H)).astype(jnp.bfloat16), q_b=jnp.zeros((1, H), jnp.float32),
            kv_w=jnp.concatenate([nrm((H, H)), nrm((H, H))], axis=1).astype(jnp.bfloat16),
            kv_b=jnp.zeros((2 * H,), jnp.float32),
            o_w=nrm((H, H)).astype(jnp.bfloat16), o_b=jnp.zeros((1, H), jnp.float32),
        ),
        "destyle_enc": fft_module("mixstyle"),
        "style_enc": fft_module("saln"),
        "unit_level_encoder": fft_module("saln"),
        "frame_level_encoder": fft_module("saln"),
    }
    # TODO(synk): StyleEncoder / emo_clf omitted (hparams['use_spk_encoder']=False path).
    return p


# ----------------------------------------------------------------------------------------------
# DurFlexEVC forward (inference path)
# ----------------------------------------------------------------------------------------------

def durflex_forward(params, hp, x_feat, spk_id, emotion_id, tgt_emotion_id, buffered_ok=False):
    ret = {}

    # forward_style_embed (use_spk_encoder=False -> embedding tables)
    src_spk = params["spk_table"][spk_id]
    src_emo = params["emo_table"][emotion_id]
    tgt_emo = params["emo_table"][tgt_emotion_id]
    src_meta = src_spk + src_emo
    tgt_meta = src_spk + tgt_emo

    # feat_proj
    x = pallas_linear(x_feat, params["feat_proj"]["w"], params["feat_proj"]["b"])  # (B,L,H) bf16
    B, L, _ = x.shape
    ones_mask = jnp.ones((B, L), jnp.float32)

    # destyle / style encoders
    x = fft_blocks(x, src_meta, params["destyle_enc"], ones_mask, buffered_ok)
    x = fft_blocks(x, tgt_meta, params["style_enc"], ones_mask, buffered_ok)

    # unit aligner: cross-attention of frames against the learned unit dictionary
    attn_out, unit_logits, unit_pred = pallas_unit_aligner(
        x, params["unit_aligner"], params["embed"], buffered_ok)
    ret["unit_logits"] = unit_logits
    ret["unit_pred"] = unit_pred

    # dedup_seq + length_regulator(counts): consecutive-run group ids (1-indexed)
    prev = jnp.concatenate([jnp.full((B, 1), -1, jnp.int32), unit_pred[:, :-1]], axis=1)
    is_new = (unit_pred != prev).astype(jnp.int32)
    mel2unit = jnp.cumsum(is_new, axis=1)   # (B, L)
    ret["mel2unit"] = mel2unit

    # group_hidden_by_segs (segment means) — static upper bound U = L, padded groups masked
    U = L
    x_u, cnt, unit_pred_g = pallas_segment_mean(attn_out, mel2unit, unit_pred, U)
    unit_mask = (cnt > 0).astype(jnp.float32)

    # unit-level encoder
    x_u = fft_blocks(x_u, tgt_meta, params["unit_level_encoder"], unit_mask, buffered_ok)
    src_nonpadding = (unit_pred_g > 0).astype(jnp.float32)[:, :, None] * unit_mask[:, :, None]
    dur_inp = x_u.astype(jnp.float32) * src_nonpadding  # noqa: F841 (duration-predictor input)

    # TODO(synk): StochasticDurationPredictor (normalizing-flow) reverse pass has no clean Pallas
    # equivalent here; durations fall back to the deterministic dedup run-lengths.
    dur = cnt * src_nonpadding[:, :, 0]
    ret["dur"] = dur

    # length regulator on those durations reproduces mel2unit; clip to frames_multiple
    m = hp["frames_multiple"]
    T_clip = (L // m) * m
    mel2ph = mel2unit[:, :T_clip]
    tgt_nonpadding = (mel2ph > 0).astype(jnp.float32)[:, :, None]
    ret["unit_nonpadding"] = tgt_nonpadding[:, :, 0]

    # expand_states: gather unit-level states back to frame level
    idx = jnp.clip(mel2ph - 1, 0, U - 1)
    x_f = jnp.take_along_axis(x_u, idx[:, :, None], axis=1).astype(jnp.float32) * tgt_nonpadding

    # F.interpolate(mode='linear') to the mel frame rate (scale = 320 / hop_size)
    l = int(round(T_clip * (320.0 / hp["hop_size"])))
    x_f = linear_interp_time(x_f, l)
    tgt_nonpadding = linear_interp_time(tgt_nonpadding, l)
    mel2ph_i = linear_interp_time(mel2ph[:, :, None].astype(jnp.float32), l)[:, :, 0].astype(jnp.int32)
    ret["mel2unit_frames"] = mel2ph_i

    # frame-level encoder + mel projection
    frame_mask = (tgt_nonpadding[:, :, 0] > 0).astype(jnp.float32)
    x_f = fft_blocks(x_f, tgt_meta, params["frame_level_encoder"], frame_mask, buffered_ok)
    mel = pallas_linear(x_f, params["proj_m"]["w"], params["proj_m"]["b"], out_dtype=jnp.float32)
    mel = mel * tgt_nonpadding
    ret["tgt_nonpadding"] = tgt_nonpadding[:, :, 0]

    # TODO(synk): score-based Diffusion U-Net decoder (reverse SDE sampling) not implemented;
    # exposing the conditioning mel projection (cond_y) instead of the diffusion output.
    ret["cond_mel"] = mel   # (B, l, n_mels)
    return ret


# ----------------------------------------------------------------------------------------------
# Driver
# ----------------------------------------------------------------------------------------------

if __name__ == "__main__":
    hparams = {
        "hidden_size": 32,
        "num_spk": 4,
        "audio_num_mel_bins": 16,
        "use_spk_encoder": False,
        "feature_dims": 24,
        "enc_layers": 1,
        "enc_kernel_size": 3,
        "num_heads": 2,
        "unit_attn_num_heads": 1,
        "unit_attn_dropout": 0.0,
        "hop_size": 256,          # scale = 320 / 256 = 1.25
        "segment_size": 32,
        "frames_multiple": 4,
        "decoder": {"dim": 16, "dim_mults": [1, 2], "pe_scale": 1000,
                    "beta_min": 0.05, "beta_max": 20.0, "spk_emb_dim": 32},
    }
    dict_size = 64
    B, L = 2, 16

    buffered_ok = buffered_weights_supported()

    root = jax.random.PRNGKey(0)
    k_param, k_x = jax.random.split(root)
    params = init_params(k_param, hparams, dict_size)

    x_feat = jax.random.normal(k_x, (B, L, hparams["feature_dims"]), dtype=jnp.float32)
    spk_id = jnp.array([0, 1], dtype=jnp.int32)
    emotion_id = jnp.array([2, 0], dtype=jnp.int32)
    tgt_emotion_id = jnp.array([1, 3], dtype=jnp.int32)

    ret = durflex_forward(params, hparams, x_feat, spk_id, emotion_id, tgt_emotion_id,
                          buffered_ok=buffered_ok)
    jax.block_until_ready(ret)

    assert ret["unit_logits"].shape == (B, L, dict_size)
    assert ret["unit_pred"].shape == (B, L)
    assert ret["cond_mel"].shape[0] == B and ret["cond_mel"].shape[-1] == hparams["audio_num_mel_bins"]
    print("KERNEL_OK")
</pallas_src>

<mosaic_0001>
module attributes {stable_mosaic.version = 11 : i64} {
  func.func @_probe_copy_kernel(%arg0: i32, %arg1: memref<8x128xf32, #tpu.memory_space<vmem>>, %arg2: memref<8x128xf32, #tpu.memory_space<vmem>>) attributes {dimension_semantics = [#tpu.dimension_semantics<arbitrary>], iteration_bounds = array<i64: 1>, scalar_prefetch = 0 : i64, scratch_operands = 0 : i64, tpu.core_type = #tpu.core_type<tc>, window_params = [{pipeline_mode = #tpu.pipeline_mode<synchronous>, transform_indices = @transform_0, window_bounds = array<i64: 8, 128>}, {pipeline_mode = #tpu.pipeline_mode<synchronous>, transform_indices = @transform_1, window_bounds = array<i64: 8, 128>}]} {
    %c0 = arith.constant 0 : index
    %c0_0 = arith.constant 0 : index
    %0 = vector.load %arg1[%c0, %c0_0] : memref<8x128xf32, #tpu.memory_space<vmem>>, vector<8x128xf32>
    %c0_1 = arith.constant 0 : index
    %c0_2 = arith.constant 0 : index
    %1 = vector.load %arg2[%c0_1, %c0_2] : memref<8x128xf32, #tpu.memory_space<vmem>>, vector<8x128xf32>
    tpu.vector_store %arg2[%c0_1, %c0_2], %0 {strides = array<i32>} : memref<8x128xf32, #tpu.memory_space<vmem>>, vector<8x128xf32>,
    return
  }
  func.func @transform_0(%arg0: i32) -> (i32, i32) {
    %c0_i32 = arith.constant 0 : i32
    %c0_i32_0 = arith.constant 0 : i32
    %c0_i32_1 = arith.constant 0 : i32
    return %c0_i32, %c0_i32_0 : i32, i32
  }
  func.func @transform_1(%arg0: i32) -> (i32, i32) {
    %c0_i32 = arith.constant 0 : i32
    %c0_i32_0 = arith.constant 0 : i32
    %c0_i32_1 = arith.constant 0 : i32
    return %c0_i32, %c0_i32_0 : i32, i32
  }
}

module attributes {stable_mosaic.version = 11 : i64} {
  func.func @kernel(%arg0: i32, %arg1: i32, %arg2: i32, %arg3: memref<32x24xbf16, #tpu.memory_space<vmem>>, %arg4: memref<24x32xbf16, #tpu.memory_space<vmem>>, %arg5: memref<1x32xf32, #tpu.memory_space<vmem>>, %arg6: memref<32x32xbf16, #tpu.memory_space<vmem>>, %arg7: memref<32x32xf32, #tpu.memory_space<vmem>>) attributes {dimension_semantics = [#tpu.dimension_semantics<parallel>, #tpu.dimension_semantics<parallel>, #tpu.dimension_semantics<arbitrary>], iteration_bounds = array<i64: 1, 1, 1>, scalar_prefetch = 0 : i64, scratch_operands = 1 : i64, tpu.core_type = #tpu.core_type<tc>, window_params = [{transform_indices = @transform_0, window_bounds = array<i64: 32, 24>}, {transform_indices = @transform_1, window_bounds = array<i64: 24, 32>}, {transform_indices = @transform_2, window_bounds = array<i64: 1, 32>}, {transform_indices = @transform_3, window_bounds = array<i64: 32, 32>}]} {
    %c0_i32 = arith.constant 0 : i32
    %0 = arith.cmpi eq, %arg2, %c0_i32 : i32
    %1 = arith.extui %0 : i1 to i32
    %c0_i32_0 = arith.constant 0 : i32
    %2 = arith.cmpi ne, %1, %c0_i32_0 : i32
    scf.if %2 {
      %c0_10 = arith.constant 0 : index
      %c0_11 = arith.constant 0 : index
      %12 = vector.load %arg5[%c0_10, %c0_11] : memref<1x32xf32, #tpu.memory_space<vmem>>, vector<1x32xf32>
      %13 = vector.shape_cast %12 : vector<1x32xf32> to vector<1x32xf32>
      %14 = vector.broadcast %13 : vector<1x32xf32> to vector<32x32xf32>
      %c0_12 = arith.constant 0 : index
      %c0_13 = arith.constant 0 : index
      %15 = vector.load %arg7[%c0_12, %c0_13] : memref<32x32xf32, #tpu.memory_space<vmem>>, vector<32x32xf32>
      tpu.vector_store %arg7[%c0_12, %c0_13], %14 {strides = array<i32>} : memref<32x32xf32, #tpu.memory_space<vmem>>, vector<32x32xf32>,
    } else {
    }
    %c0 = arith.constant 0 : index
    %c0_1 = arith.constant 0 : index
    %3 = vector.load %arg7[%c0, %c0_1] : memref<32x32xf32, #tpu.memory_space<vmem>>, vector<32x32xf32>
    %c0_2 = arith.constant 0 : index
    %c0_3 = arith.constant 0 : index
    %4 = vector.load %arg3[%c0_2, %c0_3] : memref<32x24xbf16, #tpu.memory_space<vmem>>, vector<32x24xbf16>
    %c0_4 = arith.constant 0 : index
    %c0_5 = arith.constant 0 : index
    %5 = vector.load %arg4[%c0_4, %c0_5] : memref<24x32xbf16, #tpu.memory_space<vmem>>, vector<24x32xbf16>
    %cst = arith.constant dense<0.000000e+00> : vector<32x32xf32>
    %6 = tpu.matmul %4, %5, %cst {dimension_numbers = #tpu.dot_dimension_numbers<[1], [0], [0], [1], [0, 0, 1, 1], [], []>} : vector<32x24xbf16>, vector<24x32xbf16>, vector<32x32xf32> -> vector<32x32xf32>
    %7 = arith.addf %3, %6 : vector<32x32xf32>
    %c0_6 = arith.constant 0 : index
    %c0_7 = arith.constant 0 : index
    %8 = vector.load %arg7[%c0_6, %c0_7] : memref<32x32xf32, #tpu.memory_space<vmem>>, vector<32x32xf32>
    tpu.vector_store %arg7[%c0_6, %c0_7], %7 {strides = array<i32>} : memref<32x32xf32, #tpu.memory_space<vmem>>, vector<32x32xf32>,
    %c0_i32_8 = arith.constant 0 : i32
    %9 = arith.cmpi eq, %arg2, %c0_i32_8 : i32
    %10 = arith.extui %9 : i1 to i32
    %c0_i32_9 = arith.constant 0 : i32
    %11 = arith.cmpi ne, %10, %c0_i32_9 : i32
    scf.if %11 {
      %c0_10 = arith.constant 0 : index
      %c0_11 = arith.constant 0 : index
      %12 = vector.load %arg7[%c0_10, %c0_11] : memref<32x32xf32, #tpu.memory_space<vmem>>, vector<32x32xf32>
      %13 = arith.truncf %12 : vector<32x32xf32> to vector<32x32xbf16>
      %c0_12 = arith.constant 0 : index
      %c0_13 = arith.constant 0 : index
      %14 = vector.load %arg6[%c0_12, %c0_13] : memref<32x32xbf16, #tpu.memory_space<vmem>>, vector<32x32xbf16>
      tpu.vector_store %arg6[%c0_12, %c0_13], %13 {strides = array<i32>} : memref<32x32xbf16, #tpu.memory_space<vmem>>, vector<32x32xbf16>,
    } else {
    }
    return
  }
  func.func @transform_0(%arg0: i32, %arg1: i32, %arg2: i32) -> (i32, i32) {
    %c0_i32 = arith.constant 0 : i32
    return %arg0, %arg2 : i32, i32
  }
  func.func @transform_1(%arg0: i32, %arg1: i32, %arg2: i32) -> (i32, i32) {
    %c0_i32 = arith.constant 0 : i32
    return %arg2, %arg1 : i32, i32
  }
  func.func @transform_2(%arg0: i32, %arg1: i32, %arg2: i32) -> (i32, i32) {
    %c0_i32 = arith.constant 0 : i32
    %c0_i32_0 = arith.constant 0 : i32
    return %c0_i32, %arg1 : i32, i32
  }
  func.func @transform_3(%arg0: i32, %arg1: i32, %arg2: i32) -> (i32, i32) {
    %c0_i32 = arith.constant 0 : i32
    return %arg0, %arg1 : i32, i32
  }
}

</mosaic_0001>

<llo_original>
// kernel: tpu_custom_call.1
$region0: #{tpu_custom_call.1}
  #allocation0 [shape = 'u32[]', space=smem, size = 0x4, offset = 0x4, fixed_abs, tag = 'smem constant byte address 0x4 - core index']
  #allocation1 [shape = 'u32[72,128]{1,0:T(1,128)}', space=vmem, size = 0x9000, scoped, tag = 'internal scratch']
  %s0 = inlined_call_operand.hbm [shape: f32[8,128], index: 0, kind: input, shape index: {}]
  %s1 = inlined_call_operand.hbm [shape: f32[8,128], index: 1, kind: output, shape index: {}]
  %s2 = sld [smem:[#allocation0]]
  $region18: #{tpu_custom_call.1} parent=0
    _
  %s4 = ssub.s32 1, %s2
  %s5 = scalar_select 0, %s4, %s2
  $region1: #{tpu_custom_call.1} parent=0
    #allocation2 [shape = 'u8[4096]{0}', space=vmem, size = 0x1000, scoped, tag = 'input window, operand 0, single buffered']
    #allocation3 [shape = 's32[1]{0}', space=sflag, size = 0x4, scoped, tag = 'scoped memory for tpu_custom_call.1']
    #allocation4 [shape = 's32[1]{0}', space=sflag, size = 0x4, scoped, tag = 'scoped memory for tpu_custom_call.1']
    #allocation5 [shape = 'u8[4096]{0}', space=vmem, size = 0x1000, scoped, tag = 'output window, operand 0, single buffered']
    %6 = vsyncpa [#allocation3], 0
    %7 = vsyncpa [#allocation4], 0
    // Predicated region
    $region2: #{tpu_custom_call.1} parent=1 // pred_check
      _
    $region3: #{tpu_custom_call.1} parent=1 // pred_check_branch
      %9 = sbr.rel (0) target = $region5
    $region4: #{tpu_custom_call.1} parent=1 // pred_region
      %11 = vsyncadd [#allocation3], 0
      %s13 = sshll.u32 %s0, 4
      %s14 = int_to_ptr.hbm [resolvable:$true] %s13
      %s15 = sshll.u32 [#allocation2], 4
      %s16 = int_to_ptr.vmem [resolvable:$true] %s15
      %18 = dma.hbm_to_vmem [thread:$0]  %s14, 128, %s16, [#allocation3]
    $region5: #{tpu_custom_call.1} parent=1 // pred_fallthru
      _
    // Predicated region
    $region6: #{tpu_custom_call.1} parent=1 // pred_check
      _
    $region7: #{tpu_custom_call.1} parent=1 // pred_check_branch
      %20 = sbr.rel (0) target = $region9
    $region8: #{tpu_custom_call.1} parent=1 // pred_region
      %22 = dma.done [#allocation3], 128
    $region9: #{tpu_custom_call.1} parent=1 // pred_fallthru
      _
    %v23 = vld [vmem:[#allocation2] sm:$0xff]
    %24 = vst [vmem:[#allocation5] sm:$0xff] %v23
    // Predicated region
    $region10: #{tpu_custom_call.1} parent=1 // pred_check
      _
    $region11: #{tpu_custom_call.1} parent=1 // pred_check_branch
      %26 = sbr.rel (0) target = $region13
    $region12: #{tpu_custom_call.1} parent=1 // pred_region
      %28 = vsyncadd [#allocation4], 0
      %s30 = sshll.u32 [#allocation5], 4
      %s31 = int_to_ptr.vmem [resolvable:$true] %s30
      %s32 = sshll.u32 %s1, 4
      %s33 = int_to_ptr.hbm [resolvable:$true] %s32
      %35 = dma.vmem_to_hbm [thread:$0]  %s31, 128, %s33, [#allocation4]
    $region13: #{tpu_custom_call.1} parent=1 // pred_fallthru
      _
    // Predicated region
    $region14: #{tpu_custom_call.1} parent=1 // pred_check
      _
    $region15: #{tpu_custom_call.1} parent=1 // pred_check_branch
      %37 = sbr.rel (0) target = $region17
    $region16: #{tpu_custom_call.1} parent=1 // pred_region
      %39 = dma.done [#allocation4], 128
    $region17: #{tpu_custom_call.1} parent=1 // pred_fallthru
      _
    %40 = vsyncpa [#allocation3], 1
    %41 = vsyncpa [#allocation4], 1

// kernel: tpu_custom_call.1
$region0: #{tpu_custom_call.1}
  #allocation0 [shape = 'u32[]', space=smem, size = 0x4, offset = 0x4, fixed_abs, tag = 'smem constant byte address 0x4 - core index']
  #allocation1 [shape = 'u32[72,128]{1,0:T(1,128)}', space=vmem, size = 0x9000, scoped, tag = 'internal scratch']
  #allocation2 [shape = 'f32[32,32]{1,0:T(8,128)}', space=vmem, size = 0x4000, scoped, tag = 'scratch operand']
  %s0 = inlined_call_operand.vmem [shape: bf16[32,24], index: 0, kind: input, shape index: {}]
  %s1 = inlined_call_operand.vmem [shape: bf16[24,32], index: 1, kind: input, shape index: {}]
  %s2 = inlined_call_operand.vmem [shape: f32[1,32], index: 2, kind: input, shape index: {}]
  %s3 = inlined_call_operand.hbm [shape: bf16[32,32], index: 3, kind: output, shape index: {}]
  %s4 = sld [smem:[#allocation0]]
  $region30: #{tpu_custom_call.1} parent=0
    _
  %s6 = ssub.s32 1, %s4
  %s7 = scalar_select 0, %s6, %s4
  $region1: #{tpu_custom_call.1} parent=0
    #allocation3 [shape = 'u8[8192]{0}', space=vmem, size = 0x2000, scoped, tag = 'output window, operand 0, single buffered']
    #allocation4 [shape = 's32[1]{0}', space=sflag, size = 0x4, scoped, tag = 'scoped memory for tpu_custom_call.1']
    %8 = vsyncpa [#allocation4], 0
    // Predicated region
    $region2: #{tpu_custom_call.1} parent=1 // pred_check
      _
    $region3: #{tpu_custom_call.1} parent=1 // pred_check_branch
      %10 = sbr.rel (0) target = $region5
    $region4: #{tpu_custom_call.1} parent=1 // pred_region
      _
    $region5: #{tpu_custom_call.1} parent=1 // pred_fallthru
      _
    // Predicated region
    $region6: #{tpu_custom_call.1} parent=1 // pred_check
      _
    $region7: #{tpu_custom_call.1} parent=1 // pred_check_branch
      %12 = sbr.rel (0) target = $region9
    $region8: #{tpu_custom_call.1} parent=1 // pred_region
      _
    $region9: #{tpu_custom_call.1} parent=1 // pred_fallthru
      _
    // Predicated region
    $region10: #{tpu_custom_call.1} parent=1 // pred_check
      _
    $region11: #{tpu_custom_call.1} parent=1 // pred_check_branch
      %14 = sbr.rel (0) target = $region13
    $region12: #{tpu_custom_call.1} parent=1 // pred_region
      _
    $region13: #{tpu_custom_call.1} parent=1 // pred_fallthru
      _
    %p16 = scmp.eq.s32.totalorder 0, 0
    // Predicated region
    $region14: #{tpu_custom_call.1} parent=1 // pred_check
      %p17 = pneg %p16
    $region15: #{tpu_custom_call.1} parent=1 // pred_check_branch
      %19 = sbr.rel (%p17) target = $region17
    $region16: #{tpu_custom_call.1} parent=1 // pred_region
      %v20 = vld [vmem:[%s2] sm:$0x1]
      %v22 = vperm.slane %v20, 0
      %vm24 = vcmask 261120
      %25 = vst.msk [vmem:[#allocation2] sm:$0xff] %vm24, %v22
      %26 = vst.msk [vmem:[#allocation2 + $0x8] sm:$0xff] %vm24, %v22
      %27 = vst.msk [vmem:[#allocation2 + $0x10] sm:$0xff] %vm24, %v22
      %28 = vst.msk [vmem:[#allocation2 + $0x18] sm:$0xff] %vm24, %v22
    $region17: #{tpu_custom_call.1} parent=1 // pred_fallthru
      _
    %v29 = vld [vmem:[#allocation2] sm:$0xff]
    %v30 = vld [vmem:[#allocation2 + $0x8] sm:$0xff]
    %v31 = vld [vmem:[#allocation2 + $0x10] sm:$0xff]
    %v32 = vld [vmem:[#allocation2 + $0x18] sm:$0xff]
    %v33 = vld [vmem:[%s0] sm:$0xf]
    %v34 = vld [vmem:[%s0 + $0x4] sm:$0xf]
    %v35 = vld [vmem:[%s0 + $0x8] sm:$0xf]
    %v36 = vld [vmem:[%s0 + $0xc] sm:$0xf]
    %v37 = vld [vmem:[%s1] sm:$0xf]
    %v38 = vld [vmem:[%s1 + $0x4] sm:$0xf]
    %v39 = vld [vmem:[%s1 + $0x8] sm:$0xf]
    %v44 = vunpack.c.l.b16 %v33
    %v45 = vunpack.c.l.b16 %v34
    %v46 = vunpack.c.l.b16 %v35
    %v47 = vunpack.c.l.b16 %v36
    %v48 = vpack.c.b16 %v45, %v44
    %v49 = vpack.c.b16 %v47, %v46
    %v53 = vunpack.c.l.b16 %v37
    %v54 = vunpack.c.l.b16 %v38
    %v55 = vunpack.c.l.b16 %v39
    %v56 = vpack.c.b16 %v54, %v53
    %v57 = vpack.c.b16 %v55, %v55
    %vm59 = vcmask 195584
    %v61 = vsel %vm59, %v48, 0
    %v64 = vsel %vm59, %v49, 0
    %vm66 = vcmask 1043456
    %v68 = vsel %vm66, %v57, 0
    %70 = vmatpush.bf16.msra.mxu0 0
    %71 = vmatpush.bf16.msra.mxu0 0
    %72 = vmatpush.bf16.msra.mxu0 0
    %73 = vmatpush.bf16.msra.mxu0 0
    %74 = vmatpush.bf16.msra.mxu0 0
    %75 = vmatpush.bf16.msra.mxu0 0
    %76 = vmatpush.bf16.msra.mxu0 %v68
    %77 = vmatpush.bf16.msra.mxu0 %v56
    %78 = vmatmul.bf16.gmra.mxu0 %v61
    %v79 = vpop.f32.mrf.mxu0
    %v80 = vadd.f32 0.0, %v79
    %v81 = vpop.f32.mrf.mxu0
    %v82 = vadd.f32 0.0, %v81
    %83 = vmatmul.bf16.gmra.mxu0 %v64
    %v84 = vpop.f32.mrf.mxu0
    %v85 = vadd.f32 0.0, %v84
    %v86 = vpop.f32.mrf.mxu0
    %v87 = vadd.f32 0.0, %v86
    %88 = vdwg.mxu0
    %v89 = vadd.f32 %v29, %v80
    %v90 = vadd.f32 %v30, %v82
    %v91 = vadd.f32 %v31, %v85
    %v92 = vadd.f32 %v32, %v87
    %vm93 = vcmask 261120
    %94 = vst.msk [vmem:[#allocation2] sm:$0xff] %vm93, %v89
    %95 = vst.msk [vmem:[#allocation2 + $0x8] sm:$0xff] %vm93, %v90
    %96 = vst.msk [vmem:[#allocation2 + $0x10] sm:$0xff] %vm93, %v91
    %97 = vst.msk [vmem:[#allocation2 + $0x18] sm:$0xff] %vm93, %v92
    // Predicated region
    $region18: #{tpu_custom_call.1} parent=1 // pred_check
      %p98 = pneg %p16
    $region19: #{tpu_custom_call.1} parent=1 // pred_check_branch
      %100 = sbr.rel (%p98) target = $region21
    $region20: #{tpu_custom_call.1} parent=1 // pred_region
      %v101 = vld [vmem:[#allocation2] sm:$0xff]
      %v102 = vld [vmem:[#allocation2 + $0x8] sm:$0xff]
      %v103 = vld [vmem:[#allocation2 + $0x10] sm:$0xff]
      %v104 = vld [vmem:[#allocation2 + $0x18] sm:$0xff]
      %v105 = vpack.c.bf16 %v101, %v101
      %v106 = vpack.c.bf16 %v102, %v102
      %v107 = vpack.c.bf16 %v103, %v103
      %v108 = vpack.c.bf16 %v104, %v104
      %vm109 = vcmask 257024
      %110 = vst.msk [vmem:[#allocation3] sm:$0xf] %vm109, %v105
      %111 = vst.msk [vmem:[#allocation3 + $0x4] sm:$0xf] %vm109, %v106
      %112 = vst.msk [vmem:[#allocation3 + $0x8] sm:$0xf] %vm109, %v107
      %113 = vst.msk [vmem:[#allocation3 + $0xc] sm:$0xf] %vm109, %v108
    $region21: #{tpu_custom_call.1} parent=1 // pred_fallthru
      _
    // Predicated region
    $region22: #{tpu_custom_call.1} parent=1 // pred_check
      _
    $region23: #{tpu_custom_call.1} parent=1 // pred_check_branch
      %115 = sbr.rel (0) target = $region25
    $region24: #{tpu_custom_call.1} parent=1 // pred_region
      %117 = vsyncadd [#allocation4], 0
      %s118 = sshll.u32 [#allocation3], 4
      %s119 = int_to_ptr.vmem [resolvable:$true] %s118
      %s120 = sshll.u32 %s3, 4
      %s121 = int_to_ptr.hbm [resolvable:$true] %s120
      %126 = dma.vmem_to_hbm [thread:$0]  %s119, 256, %s121, [#allocation4], 64, 64, 4
    $region25: #{tpu_custom_call.1} parent=1 // pred_fallthru
      _
    // Predicated region
    $region26: #{tpu_custom_call.1} parent=1 // pred_check
      _
    $region27: #{tpu_custom_call.1} parent=1 // pred_check_branch
      %128 = sbr.rel (0) target = $region29
    $region28: #{tpu_custom_call.1} parent=1 // pred_region
      %130 = dma.done [#allocation4], 256
    $region29: #{tpu_custom_call.1} parent=1 // pred_fallthru
      _
    %131 = vsyncpa [#allocation4], 1

</llo_original>
